<compile_context>
chip_gen: v7x
topology: tpu7x:2x2x1
jax: 0.10.0
libtpu: 0.0.40
codegen_flags: <defaults>
</compile_context>

<pallas_src>
import jax
import jax.numpy as jnp
from jax.experimental import pallas as pl
from jax.experimental.pallas import tpu as pltpu


def _round_up(x, m):
    return (x + m - 1) // m * m


# ----------------------------------------------------------------------------
# Kernel
# ----------------------------------------------------------------------------
def _make_kernel(nlayers: int, acs_dim: int, compute_dtype):
    """Full MLP forward for one (TB, *) batch tile; weights VMEM-resident."""

    def kernel(*refs):
        # refs layout:
        #   obs, acs, w0_obs, w0_acs, [w_l, b_l] * (nlayers - 1), w_out, b_out, out
        obs_ref, acs_ref, w0o_ref, w0a_ref = refs[:4]
        hidden_refs = refs[4:4 + 2 * (nlayers - 1)]
        wout_ref, bout_ref, out_ref = refs[4 + 2 * (nlayers - 1):]

        tb = obs_ref.shape[0]

        # Embedding gather folded into the first layer via one-hot matmul:
        #   onehot(acs) @ (E @ W0_emb + b0)     (exact: one-hot rows sum to 1)
        acs = acs_ref[...]                                         # (tb, 1) int32
        iota = jax.lax.broadcasted_iota(jnp.int32, (tb, acs_dim), 1)
        onehot = (iota == acs).astype(compute_dtype)               # (tb, acs_dim)

        # First linear (concat folded into split weights, b0 folded into w0_acs).
        h = jnp.dot(obs_ref[...], w0o_ref[...],
                    preferred_element_type=jnp.float32)
        h = h + jnp.dot(onehot, w0a_ref[...],
                        preferred_element_type=jnp.float32)
        h = jnp.tanh(h)                                            # f32 elementwise

        # Remaining hidden layers.
        for l in range(nlayers - 1):
            w_ref = hidden_refs[2 * l]
            b_ref = hidden_refs[2 * l + 1]
            h = jnp.tanh(jnp.dot(h.astype(compute_dtype), w_ref[...],
                                 preferred_element_type=jnp.float32)
                         + b_ref[...])

        # Output layer (identity activation), unpadded (tb, out_dim) store.
        out = jnp.dot(h.astype(compute_dtype), wout_ref[...],
                      preferred_element_type=jnp.float32) + bout_ref[...]
        out_ref[...] = out.astype(out_ref.dtype)

    return kernel


# ----------------------------------------------------------------------------
# One-time parameter preparation (hoisted out of the per-call wrapper)
# ----------------------------------------------------------------------------
def prepare_params(params, *, input_obs_dim, compute_dtype=jnp.bfloat16):
    cd = compute_dtype
    emb = params["emb"].astype(jnp.float32)                   # (acs_dim, emb_dim)
    w0, b0 = params["layers"][0]                               # w0: (obs+emb, nunits)
    w0 = w0.astype(jnp.float32)
    b0 = b0.astype(jnp.float32).reshape(1, -1)
    w0_obs = w0[:input_obs_dim]                                # (obs_dim, nunits)
    # Fold embedding table AND first-layer bias through the first layer.
    w0_acs = emb @ w0[input_obs_dim:] + b0                     # (acs_dim, nunits)
    hidden = [(w.astype(cd), b.astype(jnp.float32).reshape(1, -1))
              for (w, b) in params["layers"][1:]]
    w_out, b_out = params["out"]
    return {
        "prepared": True,
        "compute_dtype": cd,
        "input_obs_dim": int(input_obs_dim),
        "acs_dim": int(emb.shape[0]),
        "nlayers": len(params["layers"]),
        "output_obs_dim": int(w_out.shape[1]),
        "w0_obs": w0_obs.astype(cd),
        "w0_acs": w0_acs.astype(cd),
        "hidden": hidden,
        "w_out": w_out.astype(cd),
        "b_out": b_out.astype(jnp.float32).reshape(1, -1),
    }


# ----------------------------------------------------------------------------
# Wrapper
# ----------------------------------------------------------------------------
def cont_obs_disc_acs_mlp(obs, acs, params, *, compute_dtype=jnp.bfloat16,
                          block_batch=None, single_buffer_weights=True):
    """Batch-tiled Pallas forward pass.

    obs: (B, *obs_dims) float  (flattened internally, like torch.flatten(start_dim=1))
    acs: (B,) integer actions
    params: dict from init_params() (prepped on the fly) or prepare_params() (preferred).
    compute_dtype: MXU dtype if params are un-prepped (bf16 recommended; f32 accumulate).
    """
    B = obs.shape[0]
    obs_flat = obs.reshape(B, -1)
    obs_dim = obs_flat.shape[1]

    if not (isinstance(params, dict) and params.get("prepared", False)):
        params = prepare_params(params, input_obs_dim=obs_dim,
                                compute_dtype=compute_dtype)
    p = params
    cd = p["compute_dtype"]
    assert p["input_obs_dim"] == obs_dim, (p["input_obs_dim"], obs_dim)
    acs_dim = p["acs_dim"]
    nlayers = p["nlayers"]
    out_dim = p["output_obs_dim"]

    weights = [p["w0_obs"], p["w0_acs"]]
    for (w, b) in p["hidden"]:
        weights += [w, b]
    weights += [p["w_out"], p["b_out"]]

    # --- VMEM accounting (lane/sublane-padded tile footprints) ---
    def tile_bytes(shape, dtype):
        r = _round_up(shape[-2], 8) if len(shape) >= 2 else 1
        c = _round_up(shape[-1], 128)
        return r * c * jnp.dtype(dtype).itemsize

    cd_bytes = jnp.dtype(cd).itemsize
    weight_bytes = sum(tile_bytes(a.shape, a.dtype) for a in weights)
    # Per-batch-row bytes of streamed tiles: obs + acs + out (each double-buffered).
    row_bytes = (_round_up(obs_dim, 128) * cd_bytes
                 + 128 * 4
                 + _round_up(out_dim, 128) * 4)

    # Generation-aware VMEM budget: ~85% of capacity (~54 MiB v7x, ~108 MiB v5e/v6e).
    try:
        capacity = int(pltpu.get_tpu_info().vmem_capacity_bytes)
    except Exception:
        capacity = 64 * 1024 * 1024   # conservative (v7x per-TC) fallback
    budget = (capacity * 85) // 100

    # --- batch tile size (multiple of 8) ---
    if block_batch is None:
        block_batch = 1024
    tb = min(int(block_batch), _round_up(B, 8))
    if B > 8:
        # Keep >=2 grid steps so the "parallel" batch axis can split across both
        # v7x TensorCores (harmless on v5e/v6e, which have a single TC).
        tb = min(tb, _round_up(pl.cdiv(B, 2), 8))
    # Fit double-buffered streams + (conservatively x2) weights inside the budget.
    stream_budget = budget - 2 * weight_bytes - (2 << 20)
    tb_budget = max(8, (stream_budget // (2 * row_bytes)) // 8 * 8)
    tb = max(8, (min(tb, tb_budget) // 8) * 8)
    Bp = _round_up(B, tb)

    usage = 2 * weight_bytes + 2 * tb * row_bytes
    vmem_limit = int(min(budget, max(usage * 5 // 4 + (4 << 20), 32 << 20)))

    # --- streamed inputs ---
    obs_flat = obs_flat.astype(cd)
    acs_2d = acs.astype(jnp.int32).reshape(B, 1)
    if Bp != B:
        obs_flat = jnp.pad(obs_flat, ((0, Bp - B), (0, 0)))
        acs_2d = jnp.pad(acs_2d, ((0, Bp - B), (0, 0)))    # pad rows use action 0

    inputs = [obs_flat, acs_2d] + weights

    stream_specs = [pl.BlockSpec((tb, obs_dim), lambda i: (i, 0)),
                    pl.BlockSpec((tb, 1), lambda i: (i, 0))]

    def resident_spec(a, single_buffer):
        # Constant block index -> stays VMEM-resident across grid steps.
        if single_buffer:
            # Resident blocks never change; a second pipeline buffer is wasted VMEM.
            return pl.BlockSpec(a.shape, lambda i: (0, 0),
                                pipeline_mode=pl.Buffered(1))
        return pl.BlockSpec(a.shape, lambda i: (0, 0))

    def build_call(single_buffer):
        in_specs = stream_specs + [resident_spec(a, single_buffer) for a in weights]
        return pl.pallas_call(
            _make_kernel(nlayers, acs_dim, cd),
            out_shape=jax.ShapeDtypeStruct((Bp, out_dim), jnp.float32),
            grid=(Bp // tb,),
            in_specs=in_specs,
            # Unpadded output block: last block dim == full array dim is legal and
            # avoids the padded-f32 HBM writeback that dominated traffic before.
            out_specs=pl.BlockSpec((tb, out_dim), lambda i: (i, 0)),
            compiler_params=pltpu.CompilerParams(
                dimension_semantics=("parallel",),
                vmem_limit_bytes=vmem_limit),
        )

    if single_buffer_weights:
        try:
            out_padded = jax.block_until_ready(build_call(True)(*inputs))
        except Exception:
            # pipeline_mode=pl.Buffered(1) unsupported here -> default double-buffering.
            out_padded = build_call(False)(*inputs)
    else:
        out_padded = build_call(False)(*inputs)

    return out_padded[:B, :]


# ----------------------------------------------------------------------------
# Deterministic parameter init (mirrors shapes of the PyTorch module __init__)
# ----------------------------------------------------------------------------
def init_params(key, *, input_obs_dim, output_obs_dim, acs_dim,
                acs_embedding_dim, nlayers, nunits):
    keys = jax.random.split(key, 2 * (nlayers + 1) + 1)
    ki = iter(range(len(keys)))

    # nn.Embedding: N(0, 1)
    emb = jax.random.normal(keys[next(ki)], (acs_dim, acs_embedding_dim),
                            dtype=jnp.float32)

    def linear(kw, kb, fan_in, fan_out):
        bound = 1.0 / jnp.sqrt(fan_in)
        # stored as (in, out): x @ W + b  ==  torch's x @ weight.T + bias
        w = jax.random.uniform(kw, (fan_in, fan_out), jnp.float32, -bound, bound)
        b = jax.random.uniform(kb, (1, fan_out), jnp.float32, -bound, bound)
        return w, b

    layers = []
    in_size = input_obs_dim + acs_embedding_dim
    for _ in range(nlayers):
        layers.append(linear(keys[next(ki)], keys[next(ki)], in_size, nunits))
        in_size = nunits
    out = linear(keys[next(ki)], keys[next(ki)], nunits, output_obs_dim)

    return {"emb": emb, "layers": layers, "out": out}


# ----------------------------------------------------------------------------
# Pure-JAX reference (for correctness check)
# ----------------------------------------------------------------------------
def reference_forward(obs, acs, params):
    B = obs.shape[0]
    x = obs.reshape(B, -1).astype(jnp.float32)
    emb = params["emb"][acs.astype(jnp.int32)]
    h = jnp.concatenate([x, emb], axis=-1)
    for (w, b) in params["layers"]:
        h = jnp.tanh(h @ w + b)
    w, b = params["out"]
    return h @ w + b


# ----------------------------------------------------------------------------
if __name__ == "__main__":
    obs_spatial = (4, 4)                  # obs is (B, 4, 4) -> flattened to 16
    input_obs_dim = 16
    output_obs_dim = 16
    acs_dim = 6
    acs_embedding_dim = 8
    nlayers = 2
    nunits = 32

    key = jax.random.PRNGKey(0)
    k_obs, k_acs, k_par = jax.random.split(key, 3)

    params = init_params(
        k_par,
        input_obs_dim=input_obs_dim,
        output_obs_dim=output_obs_dim,
        acs_dim=acs_dim,
        acs_embedding_dim=acs_embedding_dim,
        nlayers=nlayers,
        nunits=nunits,
    )

    # --- test 1: raw-params path, f32 compute, single grid step (tight tolerance) ---
    B1 = 8
    obs1 = jax.random.normal(k_obs, (B1,) + obs_spatial, dtype=jnp.float32)
    acs1 = jax.random.randint(k_acs, (B1,), 0, acs_dim, dtype=jnp.int32)

    out1 = jax.block_until_ready(
        cont_obs_disc_acs_mlp(obs1, acs1, params, compute_dtype=jnp.float32))
    ref1 = reference_forward(obs1, acs1, params)
    assert out1.shape == (B1, output_obs_dim), out1.shape
    assert jnp.allclose(out1, ref1, atol=1e-4, rtol=1e-4), \
        float(jnp.max(jnp.abs(out1 - ref1)))

    # --- test 2: prepared-params (hoisted prep), bf16 MXU path, multi-step grid ---
    B2 = 24
    k_obs2, k_acs2 = jax.random.split(jax.random.PRNGKey(1), 2)
    obs2 = jax.random.normal(k_obs2, (B2,) + obs_spatial, dtype=jnp.float32)
    acs2 = jax.random.randint(k_acs2, (B2,), 0, acs_dim, dtype=jnp.int32)

    prepped = prepare_params(params, input_obs_dim=input_obs_dim,
                             compute_dtype=jnp.bfloat16)
    out2 = jax.block_until_ready(
        cont_obs_disc_acs_mlp(obs2, acs2, prepped, block_batch=8))
    ref2 = reference_forward(obs2, acs2, params)
    assert out2.shape == (B2, output_obs_dim), out2.shape
    assert jnp.allclose(out2, ref2, atol=3e-2, rtol=3e-2), \
        float(jnp.max(jnp.abs(out2 - ref2)))

    print("KERNEL_OK")
</pallas_src>

<mosaic_0001>
module attributes {stable_mosaic.version = 11 : i64} {
  func.func @kernel(%arg0: i32, %arg1: memref<8x16xf32, #tpu.memory_space<vmem>>, %arg2: memref<8x1xi32, #tpu.memory_space<vmem>>, %arg3: memref<16x32xf32, #tpu.memory_space<vmem>>, %arg4: memref<6x32xf32, #tpu.memory_space<vmem>>, %arg5: memref<32x32xf32, #tpu.memory_space<vmem>>, %arg6: memref<1x32xf32, #tpu.memory_space<vmem>>, %arg7: memref<32x16xf32, #tpu.memory_space<vmem>>, %arg8: memref<1x16xf32, #tpu.memory_space<vmem>>, %arg9: memref<8x16xf32, #tpu.memory_space<vmem>>) attributes {dimension_semantics = [#tpu.dimension_semantics<parallel>], iteration_bounds = array<i64: 1>, scalar_prefetch = 0 : i64, scratch_operands = 0 : i64, tpu.core_type = #tpu.core_type<tc>, window_params = [{transform_indices = @transform_0, window_bounds = array<i64: 8, 16>}, {transform_indices = @transform_1, window_bounds = array<i64: 8, 1>}, {pipeline_mode = #tpu.pipeline_mode<synchronous>, transform_indices = @transform_2, window_bounds = array<i64: 16, 32>}, {pipeline_mode = #tpu.pipeline_mode<synchronous>, transform_indices = @transform_3, window_bounds = array<i64: 6, 32>}, {pipeline_mode = #tpu.pipeline_mode<synchronous>, transform_indices = @transform_4, window_bounds = array<i64: 32, 32>}, {pipeline_mode = #tpu.pipeline_mode<synchronous>, transform_indices = @transform_5, window_bounds = array<i64: 1, 32>}, {pipeline_mode = #tpu.pipeline_mode<synchronous>, transform_indices = @transform_6, window_bounds = array<i64: 32, 16>}, {pipeline_mode = #tpu.pipeline_mode<synchronous>, transform_indices = @transform_7, window_bounds = array<i64: 1, 16>}, {transform_indices = @transform_8, window_bounds = array<i64: 8, 16>}]} {
    %c0 = arith.constant 0 : index
    %c0_0 = arith.constant 0 : index
    %0 = vector.load %arg2[%c0, %c0_0] : memref<8x1xi32, #tpu.memory_space<vmem>>, vector<8x1xi32>
    %1 = tpu.iota {dimensions = array<i32: 1>} : vector<8x6xi32>
    %2 = vector.broadcast %0 : vector<8x1xi32> to vector<8x6xi32>
    %3 = arith.cmpi eq, %1, %2 : vector<8x6xi32>
    %4 = arith.extui %3 : vector<8x6xi1> to vector<8x6xi32>
    %5 = arith.sitofp %4 : vector<8x6xi32> to vector<8x6xf32>
    %c0_1 = arith.constant 0 : index
    %c0_2 = arith.constant 0 : index
    %6 = vector.load %arg1[%c0_1, %c0_2] : memref<8x16xf32, #tpu.memory_space<vmem>>, vector<8x16xf32>
    %c0_3 = arith.constant 0 : index
    %c0_4 = arith.constant 0 : index
    %7 = vector.load %arg3[%c0_3, %c0_4] : memref<16x32xf32, #tpu.memory_space<vmem>>, vector<16x32xf32>
    %cst = arith.constant dense<0.000000e+00> : vector<8x32xf32>
    %8 = tpu.matmul %6, %7, %cst {dimension_numbers = #tpu.dot_dimension_numbers<[1], [0], [0], [1], [0, 0, 1, 1], [], []>} : vector<8x16xf32>, vector<16x32xf32>, vector<8x32xf32> -> vector<8x32xf32>
    %c0_5 = arith.constant 0 : index
    %c0_6 = arith.constant 0 : index
    %9 = vector.load %arg4[%c0_5, %c0_6] : memref<6x32xf32, #tpu.memory_space<vmem>>, vector<6x32xf32>
    %cst_7 = arith.constant dense<0.000000e+00> : vector<8x32xf32>
    %10 = tpu.matmul %5, %9, %cst_7 {dimension_numbers = #tpu.dot_dimension_numbers<[1], [0], [0], [1], [0, 0, 1, 1], [], []>} : vector<8x6xf32>, vector<6x32xf32>, vector<8x32xf32> -> vector<8x32xf32>
    %11 = arith.addf %8, %10 : vector<8x32xf32>
    %12 = math.tanh %11 : vector<8x32xf32>
    %c0_8 = arith.constant 0 : index
    %c0_9 = arith.constant 0 : index
    %13 = vector.load %arg5[%c0_8, %c0_9] : memref<32x32xf32, #tpu.memory_space<vmem>>, vector<32x32xf32>
    %cst_10 = arith.constant dense<0.000000e+00> : vector<8x32xf32>
    %14 = tpu.matmul %12, %13, %cst_10 {dimension_numbers = #tpu.dot_dimension_numbers<[1], [0], [0], [1], [0, 0, 1, 1], [], []>} : vector<8x32xf32>, vector<32x32xf32>, vector<8x32xf32> -> vector<8x32xf32>
    %c0_11 = arith.constant 0 : index
    %c0_12 = arith.constant 0 : index
    %15 = vector.load %arg6[%c0_11, %c0_12] : memref<1x32xf32, #tpu.memory_space<vmem>>, vector<1x32xf32>
    %16 = vector.broadcast %15 : vector<1x32xf32> to vector<8x32xf32>
    %17 = arith.addf %14, %16 : vector<8x32xf32>
    %18 = math.tanh %17 : vector<8x32xf32>
    %c0_13 = arith.constant 0 : index
    %c0_14 = arith.constant 0 : index
    %19 = vector.load %arg7[%c0_13, %c0_14] : memref<32x16xf32, #tpu.memory_space<vmem>>, vector<32x16xf32>
    %cst_15 = arith.constant dense<0.000000e+00> : vector<8x16xf32>
    %20 = tpu.matmul %18, %19, %cst_15 {dimension_numbers = #tpu.dot_dimension_numbers<[1], [0], [0], [1], [0, 0, 1, 1], [], []>} : vector<8x32xf32>, vector<32x16xf32>, vector<8x16xf32> -> vector<8x16xf32>
    %c0_16 = arith.constant 0 : index
    %c0_17 = arith.constant 0 : index
    %21 = vector.load %arg8[%c0_16, %c0_17] : memref<1x16xf32, #tpu.memory_space<vmem>>, vector<1x16xf32>
    %22 = vector.broadcast %21 : vector<1x16xf32> to vector<8x16xf32>
    %23 = arith.addf %20, %22 : vector<8x16xf32>
    %c0_18 = arith.constant 0 : index
    %c0_19 = arith.constant 0 : index
    %24 = vector.load %arg9[%c0_18, %c0_19] : memref<8x16xf32, #tpu.memory_space<vmem>>, vector<8x16xf32>
    tpu.vector_store %arg9[%c0_18, %c0_19], %23 {strides = array<i32>} : memref<8x16xf32, #tpu.memory_space<vmem>>, vector<8x16xf32>,
    return
  }
  func.func @transform_0(%arg0: i32) -> (i32, i32) {
    %c0_i32 = arith.constant 0 : i32
    %c0_i32_0 = arith.constant 0 : i32
    return %arg0, %c0_i32 : i32, i32
  }
  func.func @transform_1(%arg0: i32) -> (i32, i32) {
    %c0_i32 = arith.constant 0 : i32
    %c0_i32_0 = arith.constant 0 : i32
    return %arg0, %c0_i32 : i32, i32
  }
  func.func @transform_2(%arg0: i32) -> (i32, i32) {
    %c0_i32 = arith.constant 0 : i32
    %c0_i32_0 = arith.constant 0 : i32
    %c0_i32_1 = arith.constant 0 : i32
    return %c0_i32, %c0_i32_0 : i32, i32
  }
  func.func @transform_3(%arg0: i32) -> (i32, i32) {
    %c0_i32 = arith.constant 0 : i32
    %c0_i32_0 = arith.constant 0 : i32
    %c0_i32_1 = arith.constant 0 : i32
    return %c0_i32, %c0_i32_0 : i32, i32
  }
  func.func @transform_4(%arg0: i32) -> (i32, i32) {
    %c0_i32 = arith.constant 0 : i32
    %c0_i32_0 = arith.constant 0 : i32
    %c0_i32_1 = arith.constant 0 : i32
    return %c0_i32, %c0_i32_0 : i32, i32
  }
  func.func @transform_5(%arg0: i32) -> (i32, i32) {
    %c0_i32 = arith.constant 0 : i32
    %c0_i32_0 = arith.constant 0 : i32
    %c0_i32_1 = arith.constant 0 : i32
    return %c0_i32, %c0_i32_0 : i32, i32
  }
  func.func @transform_6(%arg0: i32) -> (i32, i32) {
    %c0_i32 = arith.constant 0 : i32
    %c0_i32_0 = arith.constant 0 : i32
    %c0_i32_1 = arith.constant 0 : i32
    return %c0_i32, %c0_i32_0 : i32, i32
  }
  func.func @transform_7(%arg0: i32) -> (i32, i32) {
    %c0_i32 = arith.constant 0 : i32
    %c0_i32_0 = arith.constant 0 : i32
    %c0_i32_1 = arith.constant 0 : i32
    return %c0_i32, %c0_i32_0 : i32, i32
  }
  func.func @transform_8(%arg0: i32) -> (i32, i32) {
    %c0_i32 = arith.constant 0 : i32
    %c0_i32_0 = arith.constant 0 : i32
    return %arg0, %c0_i32 : i32, i32
  }
}

module attributes {stable_mosaic.version = 11 : i64} {
  func.func @kernel(%arg0: i32, %arg1: memref<8x16xf32, #tpu.memory_space<vmem>>, %arg2: memref<8x1xi32, #tpu.memory_space<vmem>>, %arg3: memref<16x32xf32, #tpu.memory_space<vmem>>, %arg4: memref<6x32xf32, #tpu.memory_space<vmem>>, %arg5: memref<32x32xf32, #tpu.memory_space<vmem>>, %arg6: memref<1x32xf32, #tpu.memory_space<vmem>>, %arg7: memref<32x16xf32, #tpu.memory_space<vmem>>, %arg8: memref<1x16xf32, #tpu.memory_space<vmem>>, %arg9: memref<8x16xf32, #tpu.memory_space<vmem>>) attributes {dimension_semantics = [#tpu.dimension_semantics<parallel>], iteration_bounds = array<i64: 1>, scalar_prefetch = 0 : i64, scratch_operands = 0 : i64, tpu.core_type = #tpu.core_type<tc>, window_params = [{transform_indices = @transform_0, window_bounds = array<i64: 8, 16>}, {transform_indices = @transform_1, window_bounds = array<i64: 8, 1>}, {pipeline_mode = #tpu.pipeline_mode<synchronous>, transform_indices = @transform_2, window_bounds = array<i64: 16, 32>}, {pipeline_mode = #tpu.pipeline_mode<synchronous>, transform_indices = @transform_3, window_bounds = array<i64: 6, 32>}, {pipeline_mode = #tpu.pipeline_mode<synchronous>, transform_indices = @transform_4, window_bounds = array<i64: 32, 32>}, {pipeline_mode = #tpu.pipeline_mode<synchronous>, transform_indices = @transform_5, window_bounds = array<i64: 1, 32>}, {pipeline_mode = #tpu.pipeline_mode<synchronous>, transform_indices = @transform_6, window_bounds = array<i64: 32, 16>}, {pipeline_mode = #tpu.pipeline_mode<synchronous>, transform_indices = @transform_7, window_bounds = array<i64: 1, 16>}, {transform_indices = @transform_8, window_bounds = array<i64: 8, 16>}]} {
    %c0 = arith.constant 0 : index
    %c0_0 = arith.constant 0 : index
    %0 = vector.load %arg2[%c0, %c0_0] : memref<8x1xi32, #tpu.memory_space<vmem>>, vector<8x1xi32>
    %1 = tpu.iota {dimensions = array<i32: 1>} : vector<8x6xi32>
    %2 = vector.broadcast %0 : vector<8x1xi32> to vector<8x6xi32>
    %3 = arith.cmpi eq, %1, %2 : vector<8x6xi32>
    %4 = arith.extui %3 : vector<8x6xi1> to vector<8x6xi32>
    %5 = arith.sitofp %4 : vector<8x6xi32> to vector<8x6xf32>
    %c0_1 = arith.constant 0 : index
    %c0_2 = arith.constant 0 : index
    %6 = vector.load %arg1[%c0_1, %c0_2] : memref<8x16xf32, #tpu.memory_space<vmem>>, vector<8x16xf32>
    %c0_3 = arith.constant 0 : index
    %c0_4 = arith.constant 0 : index
    %7 = vector.load %arg3[%c0_3, %c0_4] : memref<16x32xf32, #tpu.memory_space<vmem>>, vector<16x32xf32>
    %cst = arith.constant dense<0.000000e+00> : vector<8x32xf32>
    %8 = tpu.matmul %6, %7, %cst {dimension_numbers = #tpu.dot_dimension_numbers<[1], [0], [0], [1], [0, 0, 1, 1], [], []>} : vector<8x16xf32>, vector<16x32xf32>, vector<8x32xf32> -> vector<8x32xf32>
    %c0_5 = arith.constant 0 : index
    %c0_6 = arith.constant 0 : index
    %9 = vector.load %arg4[%c0_5, %c0_6] : memref<6x32xf32, #tpu.memory_space<vmem>>, vector<6x32xf32>
    %cst_7 = arith.constant dense<0.000000e+00> : vector<8x32xf32>
    %10 = tpu.matmul %5, %9, %cst_7 {dimension_numbers = #tpu.dot_dimension_numbers<[1], [0], [0], [1], [0, 0, 1, 1], [], []>} : vector<8x6xf32>, vector<6x32xf32>, vector<8x32xf32> -> vector<8x32xf32>
    %11 = arith.addf %8, %10 : vector<8x32xf32>
    %12 = math.tanh %11 : vector<8x32xf32>
    %c0_8 = arith.constant 0 : index
    %c0_9 = arith.constant 0 : index
    %13 = vector.load %arg5[%c0_8, %c0_9] : memref<32x32xf32, #tpu.memory_space<vmem>>, vector<32x32xf32>
    %cst_10 = arith.constant dense<0.000000e+00> : vector<8x32xf32>
    %14 = tpu.matmul %12, %13, %cst_10 {dimension_numbers = #tpu.dot_dimension_numbers<[1], [0], [0], [1], [0, 0, 1, 1], [], []>} : vector<8x32xf32>, vector<32x32xf32>, vector<8x32xf32> -> vector<8x32xf32>
    %c0_11 = arith.constant 0 : index
    %c0_12 = arith.constant 0 : index
    %15 = vector.load %arg6[%c0_11, %c0_12] : memref<1x32xf32, #tpu.memory_space<vmem>>, vector<1x32xf32>
    %16 = vector.broadcast %15 : vector<1x32xf32> to vector<8x32xf32>
    %17 = arith.addf %14, %16 : vector<8x32xf32>
    %18 = math.tanh %17 : vector<8x32xf32>
    %c0_13 = arith.constant 0 : index
    %c0_14 = arith.constant 0 : index
    %19 = vector.load %arg7[%c0_13, %c0_14] : memref<32x16xf32, #tpu.memory_space<vmem>>, vector<32x16xf32>
    %cst_15 = arith.constant dense<0.000000e+00> : vector<8x16xf32>
    %20 = tpu.matmul %18, %19, %cst_15 {dimension_numbers = #tpu.dot_dimension_numbers<[1], [0], [0], [1], [0, 0, 1, 1], [], []>} : vector<8x32xf32>, vector<32x16xf32>, vector<8x16xf32> -> vector<8x16xf32>
    %c0_16 = arith.constant 0 : index
    %c0_17 = arith.constant 0 : index
    %21 = vector.load %arg8[%c0_16, %c0_17] : memref<1x16xf32, #tpu.memory_space<vmem>>, vector<1x16xf32>
    %22 = vector.broadcast %21 : vector<1x16xf32> to vector<8x16xf32>
    %23 = arith.addf %20, %22 : vector<8x16xf32>
    %c0_18 = arith.constant 0 : index
    %c0_19 = arith.constant 0 : index
    %24 = vector.load %arg9[%c0_18, %c0_19] : memref<8x16xf32, #tpu.memory_space<vmem>>, vector<8x16xf32>
    tpu.vector_store %arg9[%c0_18, %c0_19], %23 {strides = array<i32>} : memref<8x16xf32, #tpu.memory_space<vmem>>, vector<8x16xf32>,
    return
  }
  func.func @transform_0(%arg0: i32) -> (i32, i32) {
    %c0_i32 = arith.constant 0 : i32
    %c0_i32_0 = arith.constant 0 : i32
    return %arg0, %c0_i32 : i32, i32
  }
  func.func @transform_1(%arg0: i32) -> (i32, i32) {
    %c0_i32 = arith.constant 0 : i32
    %c0_i32_0 = arith.constant 0 : i32
    return %arg0, %c0_i32 : i32, i32
  }
  func.func @transform_2(%arg0: i32) -> (i32, i32) {
    %c0_i32 = arith.constant 0 : i32
    %c0_i32_0 = arith.constant 0 : i32
    %c0_i32_1 = arith.constant 0 : i32
    return %c0_i32, %c0_i32_0 : i32, i32
  }
  func.func @transform_3(%arg0: i32) -> (i32, i32) {
    %c0_i32 = arith.constant 0 : i32
    %c0_i32_0 = arith.constant 0 : i32
    %c0_i32_1 = arith.constant 0 : i32
    return %c0_i32, %c0_i32_0 : i32, i32
  }
  func.func @transform_4(%arg0: i32) -> (i32, i32) {
    %c0_i32 = arith.constant 0 : i32
    %c0_i32_0 = arith.constant 0 : i32
    %c0_i32_1 = arith.constant 0 : i32
    return %c0_i32, %c0_i32_0 : i32, i32
  }
  func.func @transform_5(%arg0: i32) -> (i32, i32) {
    %c0_i32 = arith.constant 0 : i32
    %c0_i32_0 = arith.constant 0 : i32
    %c0_i32_1 = arith.constant 0 : i32
    return %c0_i32, %c0_i32_0 : i32, i32
  }
  func.func @transform_6(%arg0: i32) -> (i32, i32) {
    %c0_i32 = arith.constant 0 : i32
    %c0_i32_0 = arith.constant 0 : i32
    %c0_i32_1 = arith.constant 0 : i32
    return %c0_i32, %c0_i32_0 : i32, i32
  }
  func.func @transform_7(%arg0: i32) -> (i32, i32) {
    %c0_i32 = arith.constant 0 : i32
    %c0_i32_0 = arith.constant 0 : i32
    %c0_i32_1 = arith.constant 0 : i32
    return %c0_i32, %c0_i32_0 : i32, i32
  }
  func.func @transform_8(%arg0: i32) -> (i32, i32) {
    %c0_i32 = arith.constant 0 : i32
    %c0_i32_0 = arith.constant 0 : i32
    return %arg0, %c0_i32 : i32, i32
  }
}

</mosaic_0001>

<llo_original>
// kernel: tpu_custom_call.1
$region0: #{tpu_custom_call.1}
  #allocation0 [shape = 'u32[]', space=smem, size = 0x4, offset = 0x4, fixed_abs, tag = 'smem constant byte address 0x4 - core index']
  #allocation1 [shape = 'u32[144,128]{1,0:T(1,128)}', space=vmem, size = 0x12000, scoped, tag = 'internal scratch']
  %s0 = inlined_call_operand.vmem [shape: f32[8,16], index: 0, kind: input, shape index: {}]
  %s1 = inlined_call_operand.vmem [shape: s32[8,1], index: 1, kind: input, shape index: {}]
  %s2 = inlined_call_operand.vmem [shape: f32[16,32], index: 2, kind: input, shape index: {}]
  %s3 = inlined_call_operand.hbm [shape: f32[6,32], index: 3, kind: input, shape index: {}]
  %s4 = inlined_call_operand.vmem [shape: f32[32,32], index: 4, kind: input, shape index: {}]
  %s5 = inlined_call_operand.vmem [shape: f32[1,32], index: 5, kind: input, shape index: {}]
  %s6 = inlined_call_operand.vmem [shape: f32[32,16], index: 6, kind: input, shape index: {}]
  %s7 = inlined_call_operand.vmem [shape: f32[1,16], index: 7, kind: input, shape index: {}]
  %s8 = inlined_call_operand.hbm [shape: f32[8,16], index: 8, kind: output, shape index: {}]
  %s9 = sld [smem:[#allocation0]]
  $region46: #{tpu_custom_call.1} parent=0
    _
  %s11 = ssub.s32 1, %s9
  %s12 = scalar_select 0, %s11, %s9
  $region1: #{tpu_custom_call.1} parent=0
    #allocation2 [shape = 'u8[4096]{0}', space=vmem, size = 0x1000, scoped, tag = 'input window, operand 3, single buffered']
    #allocation3 [shape = 's32[1]{0}', space=sflag, size = 0x4, scoped, tag = 'scoped memory for tpu_custom_call.1']
    #allocation4 [shape = 's32[1]{0}', space=sflag, size = 0x4, scoped, tag = 'scoped memory for tpu_custom_call.1']
    #allocation5 [shape = 'u8[4096]{0}', space=vmem, size = 0x1000, scoped, tag = 'output window, operand 0, single buffered']
    %13 = vsyncpa [#allocation3], 0
    %14 = vsyncpa [#allocation4], 0
    // Predicated region
    $region2: #{tpu_custom_call.1} parent=1 // pred_check
      _
    $region3: #{tpu_custom_call.1} parent=1 // pred_check_branch
      %16 = sbr.rel (0) target = $region5
    $region4: #{tpu_custom_call.1} parent=1 // pred_region
      _
    $region5: #{tpu_custom_call.1} parent=1 // pred_fallthru
      _
    // Predicated region
    $region6: #{tpu_custom_call.1} parent=1 // pred_check
      _
    $region7: #{tpu_custom_call.1} parent=1 // pred_check_branch
      %18 = sbr.rel (0) target = $region9
    $region8: #{tpu_custom_call.1} parent=1 // pred_region
      _
    $region9: #{tpu_custom_call.1} parent=1 // pred_fallthru
      _
    // Predicated region
    $region10: #{tpu_custom_call.1} parent=1 // pred_check
      _
    $region11: #{tpu_custom_call.1} parent=1 // pred_check_branch
      %20 = sbr.rel (0) target = $region13
    $region12: #{tpu_custom_call.1} parent=1 // pred_region
      _
    $region13: #{tpu_custom_call.1} parent=1 // pred_fallthru
      _
    // Predicated region
    $region14: #{tpu_custom_call.1} parent=1 // pred_check
      _
    $region15: #{tpu_custom_call.1} parent=1 // pred_check_branch
      %22 = sbr.rel (0) target = $region17
    $region16: #{tpu_custom_call.1} parent=1 // pred_region
      %s24 = ssub.s32 128, 128
      %25 = vsyncadd [#allocation3], %s24
      %s27 = sshll.u32 [#allocation2], 4
      %s28 = int_to_ptr.vmem [resolvable:$true] %s27
      %30 = dma.hbm_to_vmem [thread:$0]  %s3, 128, %s28, [#allocation3]
    $region17: #{tpu_custom_call.1} parent=1 // pred_fallthru
      _
    // Predicated region
    $region18: #{tpu_custom_call.1} parent=1 // pred_check
      _
    $region19: #{tpu_custom_call.1} parent=1 // pred_check_branch
      %32 = sbr.rel (0) target = $region21
    $region20: #{tpu_custom_call.1} parent=1 // pred_region
      _
    $region21: #{tpu_custom_call.1} parent=1 // pred_fallthru
      _
    // Predicated region
    $region22: #{tpu_custom_call.1} parent=1 // pred_check
      _
    $region23: #{tpu_custom_call.1} parent=1 // pred_check_branch
      %34 = sbr.rel (0) target = $region25
    $region24: #{tpu_custom_call.1} parent=1 // pred_region
      _
    $region25: #{tpu_custom_call.1} parent=1 // pred_fallthru
      _
    // Predicated region
    $region26: #{tpu_custom_call.1} parent=1 // pred_check
      _
    $region27: #{tpu_custom_call.1} parent=1 // pred_check_branch
      %36 = sbr.rel (0) target = $region29
    $region28: #{tpu_custom_call.1} parent=1 // pred_region
      _
    $region29: #{tpu_custom_call.1} parent=1 // pred_fallthru
      _
    // Predicated region
    $region30: #{tpu_custom_call.1} parent=1 // pred_check
      _
    $region31: #{tpu_custom_call.1} parent=1 // pred_check_branch
      %38 = sbr.rel (0) target = $region33
    $region32: #{tpu_custom_call.1} parent=1 // pred_region
      _
    $region33: #{tpu_custom_call.1} parent=1 // pred_fallthru
      _
    // Predicated region
    $region34: #{tpu_custom_call.1} parent=1 // pred_check
      _
    $region35: #{tpu_custom_call.1} parent=1 // pred_check_branch
      %40 = sbr.rel (0) target = $region37
    $region36: #{tpu_custom_call.1} parent=1 // pred_region
      %41 = dma.done [#allocation3], 128
    $region37: #{tpu_custom_call.1} parent=1 // pred_fallthru
      _
    %v42 = vld [vmem:[%s1] sm:$0xff]
    %v43 = vlaneseq
    %v44 = vand.u32 %v43, 127
    %45 = vset.pattern.permute.xlu0 0
    %46 = vperm.xlu0 %45, %v42
    %v47 = vpop.permute.xlu0 %46
    %vm48 = vcmp.eq.s32.totalorder %v44, %v47
    %v49 = vsel %vm48, 1, 0
    %v50 = vcvt.s32.f32 %v49
    %v51 = vld [vmem:[%s0] sm:$0xff]
    %v52 = vld [vmem:[%s2] sm:$0xff]
    %v53 = vld [vmem:[%s2 + $0x8] sm:$0xff]
    %v54 = vld [vmem:[#allocation2] sm:$0x3f]
    %vm55 = vcmask 48128
    %v57 = vsel %vm55, %v50, 0
    %vm59 = vcmask 1045504
    %v61 = vsel %vm59, %v54, 0
    %63 = vmatprep.subr.mxu0 0.0
    %64 = vmatpush1.msra.mxu0 %v61
    %65 = vmatprep.subr.mxu0 0.0
    %66 = vmatpush1.msra.mxu0 0.0
    %67 = vmatprep.subr.mxu0 0.0
    %68 = vmatpush1.msra.mxu0 0.0
    %69 = vmatprep.subr.mxu0 0.0
    %70 = vmatpush1.msra.mxu0 0.0
    %71 = vmatprep.subr.mxu0 0.0
    %72 = vmatpush1.msra.mxu0 0.0
    %73 = vmatprep.subr.mxu0 0.0
    %74 = vmatpush1.msra.mxu0 0.0
    %75 = vmatprep.subr.mxu0 0.0
    %76 = vmatpush1.msra.mxu0 0.0
    %77 = vmatprep.subr.mxu0 0.0
    %78 = vmatpush1.msra.mxu0 0.0
    %79 = vmatprep.subr.mxu0 0.0
    %80 = vmatpush1.msra.mxu0 0.0
    %81 = vmatprep.subr.mxu0 0.0
    %82 = vmatpush1.msra.mxu0 0.0
    %83 = vmatprep.subr.mxu0 0.0
    %84 = vmatpush1.msra.mxu0 0.0
    %85 = vmatprep.subr.mxu0 0.0
    %86 = vmatpush1.msra.mxu0 0.0
    %87 = vmatprep.subr.mxu0 0.0
    %88 = vmatpush1.msra.mxu0 0.0
    %89 = vmatprep.subr.mxu0 0.0
    %90 = vmatpush1.msra.mxu0 0.0
    %91 = vmatprep.subr.mxu0 0.0
    %92 = vmatpush1.msra.mxu0 0.0
    %93 = vmatprep.subr.mxu0 0.0
    %94 = vmatpush1.msra.mxu0 0.0
    %95 = vmatprep.subr.mxu0 0.0
    %96 = vmatpush1.msra.mxu0 0.0
    %97 = vmatprep.subr.mxu0 0.0
    %98 = vmatpush1.msra.mxu0 0.0
    %99 = vmatprep.subr.mxu0 0.0
    %100 = vmatpush1.msra.mxu0 0.0
    %101 = vmatprep.subr.mxu0 0.0
    %102 = vmatpush1.msra.mxu0 0.0
    %103 = vmatprep.subr.mxu0 0.0
    %104 = vmatpush1.msra.mxu0 0.0
    %105 = vmatprep.subr.mxu0 0.0
    %106 = vmatpush1.msra.mxu0 0.0
    %107 = vmatprep.subr.mxu0 0.0
    %108 = vmatpush1.msra.mxu0 0.0
    %109 = vmatprep.subr.mxu0 0.0
    %110 = vmatpush1.msra.mxu0 0.0
    %111 = vmatprep.subr.mxu0 0.0
    %112 = vmatpush1.msra.mxu0 0.0
    %113 = vmatprep.subr.mxu0 0.0
    %114 = vmatpush1.msra.mxu0 0.0
    %115 = vmatprep.subr.mxu0 0.0
    %116 = vmatpush1.msra.mxu0 0.0
    %117 = vmatprep.subr.mxu0 0.0
    %118 = vmatpush1.msra.mxu0 0.0
    %119 = vmatprep.subr.mxu0 0.0
    %120 = vmatpush1.msra.mxu0 0.0
    %121 = vmatprep.subr.mxu0 0.0
    %122 = vmatpush1.msra.mxu0 0.0
    %123 = vmatprep.subr.mxu0 0.0
    %124 = vmatpush1.msra.mxu0 0.0
    %125 = vmatprep.subr.mxu0 0.0
    %126 = vmatpush1.msra.mxu0 0.0
    %127 = vmatprep.mubr.f32.mxu0 0.0
    %128 = vmatmul.mubr.f32.gmra.mrb[0].mxu0 %v57
    %v129 = vpop.f32.mrb[0].mxu0
    %v130 = vadd.f32 0.0, %v129
    %v131 = vpop.f32.mrb[0].mxu0
    %132 = vdwg.mxu0
    %vm133 = vcmask 130048
    %v135 = vsel %vm133, %v51, 0
    %137 = vmatprep.subr.mxu0 0.0
    %138 = vmatpush1.msra.mxu0 %v52
    %139 = vmatprep.subr.mxu0 0.0
    %140 = vmatpush1.msra.mxu0 %v53
    %141 = vmatprep.subr.mxu0 0.0
    %142 = vmatpush1.msra.mxu0 0.0
    %143 = vmatprep.subr.mxu0 0.0
    %144 = vmatpush1.msra.mxu0 0.0
    %145 = vmatprep.subr.mxu0 0.0
    %146 = vmatpush1.msra.mxu0 0.0
    %147 = vmatprep.subr.mxu0 0.0
    %148 = vmatpush1.msra.mxu0 0.0
    %149 = vmatprep.subr.mxu0 0.0
    %150 = vmatpush1.msra.mxu0 0.0
    %151 = vmatprep.subr.mxu0 0.0
    %152 = vmatpush1.msra.mxu0 0.0
    %153 = vmatprep.subr.mxu0 0.0
    %154 = vmatpush1.msra.mxu0 0.0
    %155 = vmatprep.subr.mxu0 0.0
    %156 = vmatpush1.msra.mxu0 0.0
    %157 = vmatprep.subr.mxu0 0.0
    %158 = vmatpush1.msra.mxu0 0.0
    %159 = vmatprep.subr.mxu0 0.0
    %160 = vmatpush1.msra.mxu0 0.0
    %161 = vmatprep.subr.mxu0 0.0
    %162 = vmatpush1.msra.mxu0 0.0
    %163 = vmatprep.subr.mxu0 0.0
    %164 = vmatpush1.msra.mxu0 0.0
    %165 = vmatprep.subr.mxu0 0.0
    %166 = vmatpush1.msra.mxu0 0.0
    %167 = vmatprep.subr.mxu0 0.0
    %168 = vmatpush1.msra.mxu0 0.0
    %169 = vmatprep.subr.mxu0 0.0
    %170 = vmatpush1.msra.mxu0 0.0
    %171 = vmatprep.subr.mxu0 0.0
    %172 = vmatpush1.msra.mxu0 0.0
    %173 = vmatprep.subr.mxu0 0.0
    %174 = vmatpush1.msra.mxu0 0.0
    %175 = vmatprep.subr.mxu0 0.0
    %176 = vmatpush1.msra.mxu0 0.0
    %177 = vmatprep.subr.mxu0 0.0
    %178 = vmatpush1.msra.mxu0 0.0
    %179 = vmatprep.subr.mxu0 0.0
    %180 = vmatpush1.msra.mxu0 0.0
    %181 = vmatprep.subr.mxu0 0.0
    %182 = vmatpush1.msra.mxu0 0.0
    %183 = vmatprep.subr.mxu0 0.0
    %184 = vmatpush1.msra.mxu0 0.0
    %185 = vmatprep.subr.mxu0 0.0
    %186 = vmatpush1.msra.mxu0 0.0
    %187 = vmatprep.subr.mxu0 0.0
    %188 = vmatpush1.msra.mxu0 0.0
    %189 = vmatprep.subr.mxu0 0.0
    %190 = vmatpush1.msra.mxu0 0.0
    %191 = vmatprep.subr.mxu0 0.0
    %192 = vmatpush1.msra.mxu0 0.0
    %193 = vmatprep.subr.mxu0 0.0
    %194 = vmatpush1.msra.mxu0 0.0
    %195 = vmatprep.subr.mxu0 0.0
    %196 = vmatpush1.msra.mxu0 0.0
    %197 = vmatprep.subr.mxu0 0.0
    %198 = vmatpush1.msra.mxu0 0.0
    %199 = vmatprep.subr.mxu0 0.0
    %200 = vmatpush1.msra.mxu0 0.0
    %201 = vmatprep.mubr.f32.mxu0 0.0
    %202 = vmatmul.mubr.f32.gmra.mrb[0].mxu0 %v135
    %v203 = vpop.f32.mrb[0].mxu0
    %v204 = vadd.f32 %v130, %v203
    %v205 = vpop.f32.mrb[0].mxu0
    %206 = vdwg.mxu0
    %v207 = vtanh.pop %v204
    %v208 = vld [vmem:[%s4] sm:$0xff]
    %v209 = vld [vmem:[%s4 + $0x8] sm:$0xff]
    %v210 = vld [vmem:[%s4 + $0x10] sm:$0xff]
    %v211 = vld [vmem:[%s4 + $0x18] sm:$0xff]
    %v212 = vld [vmem:[%s5] sm:$0x1]
    %v214 = vlaneseq
    %v215 = vshrl.u32 %v214, 7
    %v216 = vsub.s32 0, %v215
    %v217 = vrot.slane %v212, %v216
    %vm219 = vcmask 261120
    %v221 = vsel %vm219, %v207, 0
    %223 = vmatprep.subr.mxu0 0.0
    %224 = vmatpush1.msra.mxu0 %v208
    %225 = vmatprep.subr.mxu0 0.0
    %226 = vmatpush1.msra.mxu0 %v209
    %227 = vmatprep.subr.mxu0 0.0
    %228 = vmatpush1.msra.mxu0 %v210
    %229 = vmatprep.subr.mxu0 0.0
    %230 = vmatpush1.msra.mxu0 %v211
    %231 = vmatprep.subr.mxu0 0.0
    %232 = vmatpush1.msra.mxu0 0.0
    %233 = vmatprep.subr.mxu0 0.0
    %234 = vmatpush1.msra.mxu0 0.0
    %235 = vmatprep.subr.mxu0 0.0
    %236 = vmatpush1.msra.mxu0 0.0
    %237 = vmatprep.subr.mxu0 0.0
    %238 = vmatpush1.msra.mxu0 0.0
    %239 = vmatprep.subr.mxu0 0.0
    %240 = vmatpush1.msra.mxu0 0.0
    %241 = vmatprep.subr.mxu0 0.0
    %242 = vmatpush1.msra.mxu0 0.0
    %243 = vmatprep.subr.mxu0 0.0
    %244 = vmatpush1.msra.mxu0 0.0
    %245 = vmatprep.subr.mxu0 0.0
    %246 = vmatpush1.msra.mxu0 0.0
    %247 = vmatprep.subr.mxu0 0.0
    %248 = vmatpush1.msra.mxu0 0.0
    %249 = vmatprep.subr.mxu0 0.0
    %250 = vmatpush1.msra.mxu0 0.0
    %251 = vmatprep.subr.mxu0 0.0
    %252 = vmatpush1.msra.mxu0 0.0
    %253 = vmatprep.subr.mxu0 0.0
    %254 = vmatpush1.msra.mxu0 0.0
    %255 = vmatprep.subr.mxu0 0.0
    %256 = vmatpush1.msra.mxu0 0.0
    %257 = vmatprep.subr.mxu0 0.0
    %258 = vmatpush1.msra.mxu0 0.0
    %259 = vmatprep.subr.mxu0 0.0
    %260 = vmatpush1.msra.mxu0 0.0
    %261 = vmatprep.subr.mxu0 0.0
    %262 = vmatpush1.msra.mxu0 0.0
    %263 = vmatprep.subr.mxu0 0.0
    %264 = vmatpush1.msra.mxu0 0.0
    %265 = vmatprep.subr.mxu0 0.0
    %266 = vmatpush1.msra.mxu0 0.0
    %267 = vmatprep.subr.mxu0 0.0
    %268 = vmatpush1.msra.mxu0 0.0
    %269 = vmatprep.subr.mxu0 0.0
    %270 = vmatpush1.msra.mxu0 0.0
    %271 = vmatprep.subr.mxu0 0.0
    %272 = vmatpush1.msra.mxu0 0.0
    %273 = vmatprep.subr.mxu0 0.0
    %274 = vmatpush1.msra.mxu0 0.0
    %275 = vmatprep.subr.mxu0 0.0
    %276 = vmatpush1.msra.mxu0 0.0
    %277 = vmatprep.subr.mxu0 0.0
    %278 = vmatpush1.msra.mxu0 0.0
    %279 = vmatprep.subr.mxu0 0.0
    %280 = vmatpush1.msra.mxu0 0.0
    %281 = vmatprep.subr.mxu0 0.0
    %282 = vmatpush1.msra.mxu0 0.0
    %283 = vmatprep.subr.mxu0 0.0
    %284 = vmatpush1.msra.mxu0 0.0
    %285 = vmatprep.subr.mxu0 0.0
    %286 = vmatpush1.msra.mxu0 0.0
    %287 = vmatprep.mubr.f32.mxu0 0.0
    %288 = vmatmul.mubr.f32.gmra.mrb[0].mxu0 %v221
    %v289 = vpop.f32.mrb[0].mxu0
    %v290 = vadd.f32 %v217, %v289
    %v291 = vpop.f32.mrb[0].mxu0
    %292 = vdwg.mxu0
    %v293 = vtanh.pop %v290
    %v294 = vld [vmem:[%s6] sm:$0xff]
    %v295 = vld [vmem:[%s6 + $0x8] sm:$0xff]
    %v296 = vld [vmem:[%s6 + $0x10] sm:$0xff]
    %v297 = vld [vmem:[%s6 + $0x18] sm:$0xff]
    %v298 = vld [vmem:[%s7] sm:$0x1]
    %v300 = vlaneseq
    %v301 = vshrl.u32 %v300, 7
    %v302 = vsub.s32 0, %v301
    %v303 = vrot.slane %v298, %v302
    %v306 = vsel %vm219, %v293, 0
    %308 = vmatprep.subr.mxu0 0.0
    %309 = vmatpush1.msra.mxu0 %v294
    %310 = vmatprep.subr.mxu0 0.0
    %311 = vmatpush1.msra.mxu0 %v295
    %312 = vmatprep.subr.mxu0 0.0
    %313 = vmatpush1.msra.mxu0 %v296
    %314 = vmatprep.subr.mxu0 0.0
    %315 = vmatpush1.msra.mxu0 %v297
    %316 = vmatprep.subr.mxu0 0.0
    %317 = vmatpush1.msra.mxu0 0.0
    %318 = vmatprep.subr.mxu0 0.0
    %319 = vmatpush1.msra.mxu0 0.0
    %320 = vmatprep.subr.mxu0 0.0
    %321 = vmatpush1.msra.mxu0 0.0
    %322 = vmatprep.subr.mxu0 0.0
    %323 = vmatpush1.msra.mxu0 0.0
    %324 = vmatprep.subr.mxu0 0.0
    %325 = vmatpush1.msra.mxu0 0.0
    %326 = vmatprep.subr.mxu0 0.0
    %327 = vmatpush1.msra.mxu0 0.0
    %328 = vmatprep.subr.mxu0 0.0
    %329 = vmatpush1.msra.mxu0 0.0
    %330 = vmatprep.subr.mxu0 0.0
    %331 = vmatpush1.msra.mxu0 0.0
    %332 = vmatprep.subr.mxu0 0.0
    %333 = vmatpush1.msra.mxu0 0.0
    %334 = vmatprep.subr.mxu0 0.0
    %335 = vmatpush1.msra.mxu0 0.0
    %336 = vmatprep.subr.mxu0 0.0
    %337 = vmatpush1.msra.mxu0 0.0
    %338 = vmatprep.subr.mxu0 0.0
    %339 = vmatpush1.msra.mxu0 0.0
    %340 = vmatprep.subr.mxu0 0.0
    %341 = vmatpush1.msra.mxu0 0.0
    %342 = vmatprep.subr.mxu0 0.0
    %343 = vmatpush1.msra.mxu0 0.0
    %344 = vmatprep.subr.mxu0 0.0
    %345 = vmatpush1.msra.mxu0 0.0
    %346 = vmatprep.subr.mxu0 0.0
    %347 = vmatpush1.msra.mxu0 0.0
    %348 = vmatprep.subr.mxu0 0.0
    %349 = vmatpush1.msra.mxu0 0.0
    %350 = vmatprep.subr.mxu0 0.0
    %351 = vmatpush1.msra.mxu0 0.0
    %352 = vmatprep.subr.mxu0 0.0
    %353 = vmatpush1.msra.mxu0 0.0
    %354 = vmatprep.subr.mxu0 0.0
    %355 = vmatpush1.msra.mxu0 0.0
    %356 = vmatprep.subr.mxu0 0.0
    %357 = vmatpush1.msra.mxu0 0.0
    %358 = vmatprep.subr.mxu0 0.0
    %359 = vmatpush1.msra.mxu0 0.0
    %360 = vmatprep.subr.mxu0 0.0
    %361 = vmatpush1.msra.mxu0 0.0
    %362 = vmatprep.subr.mxu0 0.0
    %363 = vmatpush1.msra.mxu0 0.0
    %364 = vmatprep.subr.mxu0 0.0
    %365 = vmatpush1.msra.mxu0 0.0
    %366 = vmatprep.subr.mxu0 0.0
    %367 = vmatpush1.msra.mxu0 0.0
    %368 = vmatprep.subr.mxu0 0.0
    %369 = vmatpush1.msra.mxu0 0.0
    %370 = vmatprep.subr.mxu0 0.0
    %371 = vmatpush1.msra.mxu0 0.0
    %372 = vmatprep.mubr.f32.mxu0 0.0
    %373 = vmatmul.mubr.f32.gmra.mrb[0].mxu0 %v306
    %v374 = vpop.f32.mrb[0].mxu0
    %v375 = vadd.f32 %v303, %v374
    %v376 = vpop.f32.mrb[0].mxu0
    %377 = vdwg.mxu0
    %378 = vst.msk [vmem:[#allocation5] sm:$0xff] %vm133, %v375
    // Predicated region
    $region38: #{tpu_custom_call.1} parent=1 // pred_check
      _
    $region39: #{tpu_custom_call.1} parent=1 // pred_check_branch
      %380 = sbr.rel (0) target = $region41
    $region40: #{tpu_custom_call.1} parent=1 // pred_region
      %s382 = ssub.s32 128, 128
      %383 = vsyncadd [#allocation4], %s382
      %s385 = sshll.u32 [#allocation5], 4
      %s386 = int_to_ptr.vmem [resolvable:$true] %s385
      %388 = dma.vmem_to_hbm [thread:$0]  %s386, 128, %s8, [#allocation4]
    $region41: #{tpu_custom_call.1} parent=1 // pred_fallthru
      _
    // Predicated region
    $region42: #{tpu_custom_call.1} parent=1 // pred_check
      _
    $region43: #{tpu_custom_call.1} parent=1 // pred_check_branch
      %390 = sbr.rel (0) target = $region45
    $region44: #{tpu_custom_call.1} parent=1 // pred_region
      %391 = dma.done [#allocation4], 128
    $region45: #{tpu_custom_call.1} parent=1 // pred_fallthru
      _
    %392 = vsyncpa [#allocation3], 1
    %393 = vsyncpa [#allocation4], 1

// kernel: tpu_custom_call.1
$region0: #{tpu_custom_call.1}
  #allocation0 [shape = 'u32[]', space=smem, size = 0x4, offset = 0x4, fixed_abs, tag = 'smem constant byte address 0x4 - core index']
  #allocation1 [shape = 'u32[144,128]{1,0:T(1,128)}', space=vmem, size = 0x12000, scoped, tag = 'internal scratch']
  %s0 = inlined_call_operand.vmem [shape: f32[8,16], index: 0, kind: input, shape index: {}]
  %s1 = inlined_call_operand.vmem [shape: s32[8,1], index: 1, kind: input, shape index: {}]
  %s2 = inlined_call_operand.vmem [shape: f32[16,32], index: 2, kind: input, shape index: {}]
  %s3 = inlined_call_operand.hbm [shape: f32[6,32], index: 3, kind: input, shape index: {}]
  %s4 = inlined_call_operand.vmem [shape: f32[32,32], index: 4, kind: input, shape index: {}]
  %s5 = inlined_call_operand.vmem [shape: f32[1,32], index: 5, kind: input, shape index: {}]
  %s6 = inlined_call_operand.vmem [shape: f32[32,16], index: 6, kind: input, shape index: {}]
  %s7 = inlined_call_operand.vmem [shape: f32[1,16], index: 7, kind: input, shape index: {}]
  %s8 = inlined_call_operand.hbm [shape: f32[8,16], index: 8, kind: output, shape index: {}]
  %s9 = sld [smem:[#allocation0]]
  $region46: #{tpu_custom_call.1} parent=0
    _
  %s11 = ssub.s32 1, %s9
  %s12 = scalar_select 0, %s11, %s9
  $region1: #{tpu_custom_call.1} parent=0
    #allocation2 [shape = 'u8[4096]{0}', space=vmem, size = 0x1000, scoped, tag = 'input window, operand 3, single buffered']
    #allocation3 [shape = 's32[1]{0}', space=sflag, size = 0x4, scoped, tag = 'scoped memory for tpu_custom_call.1']
    #allocation4 [shape = 's32[1]{0}', space=sflag, size = 0x4, scoped, tag = 'scoped memory for tpu_custom_call.1']
    #allocation5 [shape = 'u8[4096]{0}', space=vmem, size = 0x1000, scoped, tag = 'output window, operand 0, single buffered']
    %13 = vsyncpa [#allocation3], 0
    %14 = vsyncpa [#allocation4], 0
    // Predicated region
    $region2: #{tpu_custom_call.1} parent=1 // pred_check
      _
    $region3: #{tpu_custom_call.1} parent=1 // pred_check_branch
      %16 = sbr.rel (0) target = $region5
    $region4: #{tpu_custom_call.1} parent=1 // pred_region
      _
    $region5: #{tpu_custom_call.1} parent=1 // pred_fallthru
      _
    // Predicated region
    $region6: #{tpu_custom_call.1} parent=1 // pred_check
      _
    $region7: #{tpu_custom_call.1} parent=1 // pred_check_branch
      %18 = sbr.rel (0) target = $region9
    $region8: #{tpu_custom_call.1} parent=1 // pred_region
      _
    $region9: #{tpu_custom_call.1} parent=1 // pred_fallthru
      _
    // Predicated region
    $region10: #{tpu_custom_call.1} parent=1 // pred_check
      _
    $region11: #{tpu_custom_call.1} parent=1 // pred_check_branch
      %20 = sbr.rel (0) target = $region13
    $region12: #{tpu_custom_call.1} parent=1 // pred_region
      _
    $region13: #{tpu_custom_call.1} parent=1 // pred_fallthru
      _
    // Predicated region
    $region14: #{tpu_custom_call.1} parent=1 // pred_check
      _
    $region15: #{tpu_custom_call.1} parent=1 // pred_check_branch
      %22 = sbr.rel (0) target = $region17
    $region16: #{tpu_custom_call.1} parent=1 // pred_region
      %s24 = ssub.s32 128, 128
      %25 = vsyncadd [#allocation3], %s24
      %s27 = sshll.u32 [#allocation2], 4
      %s28 = int_to_ptr.vmem [resolvable:$true] %s27
      %30 = dma.hbm_to_vmem [thread:$0]  %s3, 128, %s28, [#allocation3]
    $region17: #{tpu_custom_call.1} parent=1 // pred_fallthru
      _
    // Predicated region
    $region18: #{tpu_custom_call.1} parent=1 // pred_check
      _
    $region19: #{tpu_custom_call.1} parent=1 // pred_check_branch
      %32 = sbr.rel (0) target = $region21
    $region20: #{tpu_custom_call.1} parent=1 // pred_region
      _
    $region21: #{tpu_custom_call.1} parent=1 // pred_fallthru
      _
    // Predicated region
    $region22: #{tpu_custom_call.1} parent=1 // pred_check
      _
    $region23: #{tpu_custom_call.1} parent=1 // pred_check_branch
      %34 = sbr.rel (0) target = $region25
    $region24: #{tpu_custom_call.1} parent=1 // pred_region
      _
    $region25: #{tpu_custom_call.1} parent=1 // pred_fallthru
      _
    // Predicated region
    $region26: #{tpu_custom_call.1} parent=1 // pred_check
      _
    $region27: #{tpu_custom_call.1} parent=1 // pred_check_branch
      %36 = sbr.rel (0) target = $region29
    $region28: #{tpu_custom_call.1} parent=1 // pred_region
      _
    $region29: #{tpu_custom_call.1} parent=1 // pred_fallthru
      _
    // Predicated region
    $region30: #{tpu_custom_call.1} parent=1 // pred_check
      _
    $region31: #{tpu_custom_call.1} parent=1 // pred_check_branch
      %38 = sbr.rel (0) target = $region33
    $region32: #{tpu_custom_call.1} parent=1 // pred_region
      _
    $region33: #{tpu_custom_call.1} parent=1 // pred_fallthru
      _
    // Predicated region
    $region34: #{tpu_custom_call.1} parent=1 // pred_check
      _
    $region35: #{tpu_custom_call.1} parent=1 // pred_check_branch
      %40 = sbr.rel (0) target = $region37
    $region36: #{tpu_custom_call.1} parent=1 // pred_region
      %41 = dma.done [#allocation3], 128
    $region37: #{tpu_custom_call.1} parent=1 // pred_fallthru
      _
    %v42 = vld [vmem:[%s1] sm:$0xff]
    %v43 = vlaneseq
    %v44 = vand.u32 %v43, 127
    %45 = vset.pattern.permute.xlu0 0
    %46 = vperm.xlu0 %45, %v42
    %v47 = vpop.permute.xlu0 %46
    %vm48 = vcmp.eq.s32.totalorder %v44, %v47
    %v49 = vsel %vm48, 1, 0
    %v50 = vcvt.s32.f32 %v49
    %v51 = vld [vmem:[%s0] sm:$0xff]
    %v52 = vld [vmem:[%s2] sm:$0xff]
    %v53 = vld [vmem:[%s2 + $0x8] sm:$0xff]
    %v54 = vld [vmem:[#allocation2] sm:$0x3f]
    %vm55 = vcmask 48128
    %v57 = vsel %vm55, %v50, 0
    %vm59 = vcmask 1045504
    %v61 = vsel %vm59, %v54, 0
    %63 = vmatprep.subr.mxu0 0.0
    %64 = vmatpush1.msra.mxu0 %v61
    %65 = vmatprep.subr.mxu0 0.0
    %66 = vmatpush1.msra.mxu0 0.0
    %67 = vmatprep.subr.mxu0 0.0
    %68 = vmatpush1.msra.mxu0 0.0
    %69 = vmatprep.subr.mxu0 0.0
    %70 = vmatpush1.msra.mxu0 0.0
    %71 = vmatprep.subr.mxu0 0.0
    %72 = vmatpush1.msra.mxu0 0.0
    %73 = vmatprep.subr.mxu0 0.0
    %74 = vmatpush1.msra.mxu0 0.0
    %75 = vmatprep.subr.mxu0 0.0
    %76 = vmatpush1.msra.mxu0 0.0
    %77 = vmatprep.subr.mxu0 0.0
    %78 = vmatpush1.msra.mxu0 0.0
    %79 = vmatprep.subr.mxu0 0.0
    %80 = vmatpush1.msra.mxu0 0.0
    %81 = vmatprep.subr.mxu0 0.0
    %82 = vmatpush1.msra.mxu0 0.0
    %83 = vmatprep.subr.mxu0 0.0
    %84 = vmatpush1.msra.mxu0 0.0
    %85 = vmatprep.subr.mxu0 0.0
    %86 = vmatpush1.msra.mxu0 0.0
    %87 = vmatprep.subr.mxu0 0.0
    %88 = vmatpush1.msra.mxu0 0.0
    %89 = vmatprep.subr.mxu0 0.0
    %90 = vmatpush1.msra.mxu0 0.0
    %91 = vmatprep.subr.mxu0 0.0
    %92 = vmatpush1.msra.mxu0 0.0
    %93 = vmatprep.subr.mxu0 0.0
    %94 = vmatpush1.msra.mxu0 0.0
    %95 = vmatprep.subr.mxu0 0.0
    %96 = vmatpush1.msra.mxu0 0.0
    %97 = vmatprep.subr.mxu0 0.0
    %98 = vmatpush1.msra.mxu0 0.0
    %99 = vmatprep.subr.mxu0 0.0
    %100 = vmatpush1.msra.mxu0 0.0
    %101 = vmatprep.subr.mxu0 0.0
    %102 = vmatpush1.msra.mxu0 0.0
    %103 = vmatprep.subr.mxu0 0.0
    %104 = vmatpush1.msra.mxu0 0.0
    %105 = vmatprep.subr.mxu0 0.0
    %106 = vmatpush1.msra.mxu0 0.0
    %107 = vmatprep.subr.mxu0 0.0
    %108 = vmatpush1.msra.mxu0 0.0
    %109 = vmatprep.subr.mxu0 0.0
    %110 = vmatpush1.msra.mxu0 0.0
    %111 = vmatprep.subr.mxu0 0.0
    %112 = vmatpush1.msra.mxu0 0.0
    %113 = vmatprep.subr.mxu0 0.0
    %114 = vmatpush1.msra.mxu0 0.0
    %115 = vmatprep.subr.mxu0 0.0
    %116 = vmatpush1.msra.mxu0 0.0
    %117 = vmatprep.subr.mxu0 0.0
    %118 = vmatpush1.msra.mxu0 0.0
    %119 = vmatprep.subr.mxu0 0.0
    %120 = vmatpush1.msra.mxu0 0.0
    %121 = vmatprep.subr.mxu0 0.0
    %122 = vmatpush1.msra.mxu0 0.0
    %123 = vmatprep.subr.mxu0 0.0
    %124 = vmatpush1.msra.mxu0 0.0
    %125 = vmatprep.subr.mxu0 0.0
    %126 = vmatpush1.msra.mxu0 0.0
    %127 = vmatprep.mubr.f32.mxu0 0.0
    %128 = vmatmul.mubr.f32.gmra.mrb[0].mxu0 %v57
    %v129 = vpop.f32.mrb[0].mxu0
    %v130 = vadd.f32 0.0, %v129
    %v131 = vpop.f32.mrb[0].mxu0
    %132 = vdwg.mxu0
    %vm133 = vcmask 130048
    %v135 = vsel %vm133, %v51, 0
    %137 = vmatprep.subr.mxu0 0.0
    %138 = vmatpush1.msra.mxu0 %v52
    %139 = vmatprep.subr.mxu0 0.0
    %140 = vmatpush1.msra.mxu0 %v53
    %141 = vmatprep.subr.mxu0 0.0
    %142 = vmatpush1.msra.mxu0 0.0
    %143 = vmatprep.subr.mxu0 0.0
    %144 = vmatpush1.msra.mxu0 0.0
    %145 = vmatprep.subr.mxu0 0.0
    %146 = vmatpush1.msra.mxu0 0.0
    %147 = vmatprep.subr.mxu0 0.0
    %148 = vmatpush1.msra.mxu0 0.0
    %149 = vmatprep.subr.mxu0 0.0
    %150 = vmatpush1.msra.mxu0 0.0
    %151 = vmatprep.subr.mxu0 0.0
    %152 = vmatpush1.msra.mxu0 0.0
    %153 = vmatprep.subr.mxu0 0.0
    %154 = vmatpush1.msra.mxu0 0.0
    %155 = vmatprep.subr.mxu0 0.0
    %156 = vmatpush1.msra.mxu0 0.0
    %157 = vmatprep.subr.mxu0 0.0
    %158 = vmatpush1.msra.mxu0 0.0
    %159 = vmatprep.subr.mxu0 0.0
    %160 = vmatpush1.msra.mxu0 0.0
    %161 = vmatprep.subr.mxu0 0.0
    %162 = vmatpush1.msra.mxu0 0.0
    %163 = vmatprep.subr.mxu0 0.0
    %164 = vmatpush1.msra.mxu0 0.0
    %165 = vmatprep.subr.mxu0 0.0
    %166 = vmatpush1.msra.mxu0 0.0
    %167 = vmatprep.subr.mxu0 0.0
    %168 = vmatpush1.msra.mxu0 0.0
    %169 = vmatprep.subr.mxu0 0.0
    %170 = vmatpush1.msra.mxu0 0.0
    %171 = vmatprep.subr.mxu0 0.0
    %172 = vmatpush1.msra.mxu0 0.0
    %173 = vmatprep.subr.mxu0 0.0
    %174 = vmatpush1.msra.mxu0 0.0
    %175 = vmatprep.subr.mxu0 0.0
    %176 = vmatpush1.msra.mxu0 0.0
    %177 = vmatprep.subr.mxu0 0.0
    %178 = vmatpush1.msra.mxu0 0.0
    %179 = vmatprep.subr.mxu0 0.0
    %180 = vmatpush1.msra.mxu0 0.0
    %181 = vmatprep.subr.mxu0 0.0
    %182 = vmatpush1.msra.mxu0 0.0
    %183 = vmatprep.subr.mxu0 0.0
    %184 = vmatpush1.msra.mxu0 0.0
    %185 = vmatprep.subr.mxu0 0.0
    %186 = vmatpush1.msra.mxu0 0.0
    %187 = vmatprep.subr.mxu0 0.0
    %188 = vmatpush1.msra.mxu0 0.0
    %189 = vmatprep.subr.mxu0 0.0
    %190 = vmatpush1.msra.mxu0 0.0
    %191 = vmatprep.subr.mxu0 0.0
    %192 = vmatpush1.msra.mxu0 0.0
    %193 = vmatprep.subr.mxu0 0.0
    %194 = vmatpush1.msra.mxu0 0.0
    %195 = vmatprep.subr.mxu0 0.0
    %196 = vmatpush1.msra.mxu0 0.0
    %197 = vmatprep.subr.mxu0 0.0
    %198 = vmatpush1.msra.mxu0 0.0
    %199 = vmatprep.subr.mxu0 0.0
    %200 = vmatpush1.msra.mxu0 0.0
    %201 = vmatprep.mubr.f32.mxu0 0.0
    %202 = vmatmul.mubr.f32.gmra.mrb[0].mxu0 %v135
    %v203 = vpop.f32.mrb[0].mxu0
    %v204 = vadd.f32 %v130, %v203
    %v205 = vpop.f32.mrb[0].mxu0
    %206 = vdwg.mxu0
    %v207 = vtanh.pop %v204
    %v208 = vld [vmem:[%s4] sm:$0xff]
    %v209 = vld [vmem:[%s4 + $0x8] sm:$0xff]
    %v210 = vld [vmem:[%s4 + $0x10] sm:$0xff]
    %v211 = vld [vmem:[%s4 + $0x18] sm:$0xff]
    %v212 = vld [vmem:[%s5] sm:$0x1]
    %v214 = vlaneseq
    %v215 = vshrl.u32 %v214, 7
    %v216 = vsub.s32 0, %v215
    %v217 = vrot.slane %v212, %v216
    %vm219 = vcmask 261120
    %v221 = vsel %vm219, %v207, 0
    %223 = vmatprep.subr.mxu0 0.0
    %224 = vmatpush1.msra.mxu0 %v208
    %225 = vmatprep.subr.mxu0 0.0
    %226 = vmatpush1.msra.mxu0 %v209
    %227 = vmatprep.subr.mxu0 0.0
    %228 = vmatpush1.msra.mxu0 %v210
    %229 = vmatprep.subr.mxu0 0.0
    %230 = vmatpush1.msra.mxu0 %v211
    %231 = vmatprep.subr.mxu0 0.0
    %232 = vmatpush1.msra.mxu0 0.0
    %233 = vmatprep.subr.mxu0 0.0
    %234 = vmatpush1.msra.mxu0 0.0
    %235 = vmatprep.subr.mxu0 0.0
    %236 = vmatpush1.msra.mxu0 0.0
    %237 = vmatprep.subr.mxu0 0.0
    %238 = vmatpush1.msra.mxu0 0.0
    %239 = vmatprep.subr.mxu0 0.0
    %240 = vmatpush1.msra.mxu0 0.0
    %241 = vmatprep.subr.mxu0 0.0
    %242 = vmatpush1.msra.mxu0 0.0
    %243 = vmatprep.subr.mxu0 0.0
    %244 = vmatpush1.msra.mxu0 0.0
    %245 = vmatprep.subr.mxu0 0.0
    %246 = vmatpush1.msra.mxu0 0.0
    %247 = vmatprep.subr.mxu0 0.0
    %248 = vmatpush1.msra.mxu0 0.0
    %249 = vmatprep.subr.mxu0 0.0
    %250 = vmatpush1.msra.mxu0 0.0
    %251 = vmatprep.subr.mxu0 0.0
    %252 = vmatpush1.msra.mxu0 0.0
    %253 = vmatprep.subr.mxu0 0.0
    %254 = vmatpush1.msra.mxu0 0.0
    %255 = vmatprep.subr.mxu0 0.0
    %256 = vmatpush1.msra.mxu0 0.0
    %257 = vmatprep.subr.mxu0 0.0
    %258 = vmatpush1.msra.mxu0 0.0
    %259 = vmatprep.subr.mxu0 0.0
    %260 = vmatpush1.msra.mxu0 0.0
    %261 = vmatprep.subr.mxu0 0.0
    %262 = vmatpush1.msra.mxu0 0.0
    %263 = vmatprep.subr.mxu0 0.0
    %264 = vmatpush1.msra.mxu0 0.0
    %265 = vmatprep.subr.mxu0 0.0
    %266 = vmatpush1.msra.mxu0 0.0
    %267 = vmatprep.subr.mxu0 0.0
    %268 = vmatpush1.msra.mxu0 0.0
    %269 = vmatprep.subr.mxu0 0.0
    %270 = vmatpush1.msra.mxu0 0.0
    %271 = vmatprep.subr.mxu0 0.0
    %272 = vmatpush1.msra.mxu0 0.0
    %273 = vmatprep.subr.mxu0 0.0
    %274 = vmatpush1.msra.mxu0 0.0
    %275 = vmatprep.subr.mxu0 0.0
    %276 = vmatpush1.msra.mxu0 0.0
    %277 = vmatprep.subr.mxu0 0.0
    %278 = vmatpush1.msra.mxu0 0.0
    %279 = vmatprep.subr.mxu0 0.0
    %280 = vmatpush1.msra.mxu0 0.0
    %281 = vmatprep.subr.mxu0 0.0
    %282 = vmatpush1.msra.mxu0 0.0
    %283 = vmatprep.subr.mxu0 0.0
    %284 = vmatpush1.msra.mxu0 0.0
    %285 = vmatprep.subr.mxu0 0.0
    %286 = vmatpush1.msra.mxu0 0.0
    %287 = vmatprep.mubr.f32.mxu0 0.0
    %288 = vmatmul.mubr.f32.gmra.mrb[0].mxu0 %v221
    %v289 = vpop.f32.mrb[0].mxu0
    %v290 = vadd.f32 %v217, %v289
    %v291 = vpop.f32.mrb[0].mxu0
    %292 = vdwg.mxu0
    %v293 = vtanh.pop %v290
    %v294 = vld [vmem:[%s6] sm:$0xff]
    %v295 = vld [vmem:[%s6 + $0x8] sm:$0xff]
    %v296 = vld [vmem:[%s6 + $0x10] sm:$0xff]
    %v297 = vld [vmem:[%s6 + $0x18] sm:$0xff]
    %v298 = vld [vmem:[%s7] sm:$0x1]
    %v300 = vlaneseq
    %v301 = vshrl.u32 %v300, 7
    %v302 = vsub.s32 0, %v301
    %v303 = vrot.slane %v298, %v302
    %v306 = vsel %vm219, %v293, 0
    %308 = vmatprep.subr.mxu0 0.0
    %309 = vmatpush1.msra.mxu0 %v294
    %310 = vmatprep.subr.mxu0 0.0
    %311 = vmatpush1.msra.mxu0 %v295
    %312 = vmatprep.subr.mxu0 0.0
    %313 = vmatpush1.msra.mxu0 %v296
    %314 = vmatprep.subr.mxu0 0.0
    %315 = vmatpush1.msra.mxu0 %v297
    %316 = vmatprep.subr.mxu0 0.0
    %317 = vmatpush1.msra.mxu0 0.0
    %318 = vmatprep.subr.mxu0 0.0
    %319 = vmatpush1.msra.mxu0 0.0
    %320 = vmatprep.subr.mxu0 0.0
    %321 = vmatpush1.msra.mxu0 0.0
    %322 = vmatprep.subr.mxu0 0.0
    %323 = vmatpush1.msra.mxu0 0.0
    %324 = vmatprep.subr.mxu0 0.0
    %325 = vmatpush1.msra.mxu0 0.0
    %326 = vmatprep.subr.mxu0 0.0
    %327 = vmatpush1.msra.mxu0 0.0
    %328 = vmatprep.subr.mxu0 0.0
    %329 = vmatpush1.msra.mxu0 0.0
    %330 = vmatprep.subr.mxu0 0.0
    %331 = vmatpush1.msra.mxu0 0.0
    %332 = vmatprep.subr.mxu0 0.0
    %333 = vmatpush1.msra.mxu0 0.0
    %334 = vmatprep.subr.mxu0 0.0
    %335 = vmatpush1.msra.mxu0 0.0
    %336 = vmatprep.subr.mxu0 0.0
    %337 = vmatpush1.msra.mxu0 0.0
    %338 = vmatprep.subr.mxu0 0.0
    %339 = vmatpush1.msra.mxu0 0.0
    %340 = vmatprep.subr.mxu0 0.0
    %341 = vmatpush1.msra.mxu0 0.0
    %342 = vmatprep.subr.mxu0 0.0
    %343 = vmatpush1.msra.mxu0 0.0
    %344 = vmatprep.subr.mxu0 0.0
    %345 = vmatpush1.msra.mxu0 0.0
    %346 = vmatprep.subr.mxu0 0.0
    %347 = vmatpush1.msra.mxu0 0.0
    %348 = vmatprep.subr.mxu0 0.0
    %349 = vmatpush1.msra.mxu0 0.0
    %350 = vmatprep.subr.mxu0 0.0
    %351 = vmatpush1.msra.mxu0 0.0
    %352 = vmatprep.subr.mxu0 0.0
    %353 = vmatpush1.msra.mxu0 0.0
    %354 = vmatprep.subr.mxu0 0.0
    %355 = vmatpush1.msra.mxu0 0.0
    %356 = vmatprep.subr.mxu0 0.0
    %357 = vmatpush1.msra.mxu0 0.0
    %358 = vmatprep.subr.mxu0 0.0
    %359 = vmatpush1.msra.mxu0 0.0
    %360 = vmatprep.subr.mxu0 0.0
    %361 = vmatpush1.msra.mxu0 0.0
    %362 = vmatprep.subr.mxu0 0.0
    %363 = vmatpush1.msra.mxu0 0.0
    %364 = vmatprep.subr.mxu0 0.0
    %365 = vmatpush1.msra.mxu0 0.0
    %366 = vmatprep.subr.mxu0 0.0
    %367 = vmatpush1.msra.mxu0 0.0
    %368 = vmatprep.subr.mxu0 0.0
    %369 = vmatpush1.msra.mxu0 0.0
    %370 = vmatprep.subr.mxu0 0.0
    %371 = vmatpush1.msra.mxu0 0.0
    %372 = vmatprep.mubr.f32.mxu0 0.0
    %373 = vmatmul.mubr.f32.gmra.mrb[0].mxu0 %v306
    %v374 = vpop.f32.mrb[0].mxu0
    %v375 = vadd.f32 %v303, %v374
    %v376 = vpop.f32.mrb[0].mxu0
    %377 = vdwg.mxu0
    %378 = vst.msk [vmem:[#allocation5] sm:$0xff] %vm133, %v375
    // Predicated region
    $region38: #{tpu_custom_call.1} parent=1 // pred_check
      _
    $region39: #{tpu_custom_call.1} parent=1 // pred_check_branch
      %380 = sbr.rel (0) target = $region41
    $region40: #{tpu_custom_call.1} parent=1 // pred_region
      %s382 = ssub.s32 128, 128
      %383 = vsyncadd [#allocation4], %s382
      %s385 = sshll.u32 [#allocation5], 4
      %s386 = int_to_ptr.vmem [resolvable:$true] %s385
      %388 = dma.vmem_to_hbm [thread:$0]  %s386, 128, %s8, [#allocation4]
    $region41: #{tpu_custom_call.1} parent=1 // pred_fallthru
      _
    // Predicated region
    $region42: #{tpu_custom_call.1} parent=1 // pred_check
      _
    $region43: #{tpu_custom_call.1} parent=1 // pred_check_branch
      %390 = sbr.rel (0) target = $region45
    $region44: #{tpu_custom_call.1} parent=1 // pred_region
      %391 = dma.done [#allocation4], 128
    $region45: #{tpu_custom_call.1} parent=1 // pred_fallthru
      _
    %392 = vsyncpa [#allocation3], 1
    %393 = vsyncpa [#allocation4], 1

</llo_original>
